<compile_context>
chip_gen: v7x
topology: tpu7x:2x2x1
jax: 0.10.0
libtpu: 0.0.40
codegen_flags: <defaults>
</compile_context>

<pallas_src>
import jax
import jax.numpy as jnp
from jax.experimental import pallas as pl
from jax.experimental.pallas import tpu as pltpu


def _round_up(n: int, m: int) -> int:
    return ((n + m - 1) // m) * m


def autoencoder_kernel(x_ref, w1t_ref, b1_ref, w2t_ref, b2_ref, o_ref):
    # x_ref: (TB, 15) row-major block -- batch on sublanes, features on lanes.
    x = x_ref[...]
    # Encoder: h = relu(x @ W1^T + b1)              -> (TB, 45)
    h = jnp.dot(x, w1t_ref[...], preferred_element_type=jnp.float32)
    h = jnp.maximum(h + b1_ref[...], 0.0)           # (TB,45) + (1,45) broadcast
    # Decoder: y = sigmoid(h @ W2^T + b2)           -> (TB, 15)
    y = jnp.dot(h, w2t_ref[...], preferred_element_type=jnp.float32)
    y = y + b2_ref[...]                             # (TB,15) + (1,15) broadcast
    # Sigmoid as 0.5*tanh(0.5*y)+0.5: single EUP op, robust for very negative y.
    o_ref[...] = (0.5 * jnp.tanh(0.5 * y) + 0.5).astype(o_ref.dtype)


def autoencoder_forward(x, w1, b1, w2, b2, *, tb: int = 8192, min_steps: int = 8):
    """x: (B, 15) f32.  w1: (45, 15), b1: (45,), w2: (15, 45), b2: (15,)  (PyTorch [out,in]).
    Returns (B, 15) f32."""
    B, D_in = x.shape
    D_hid = w1.shape[0]   # 45
    D_out = w2.shape[0]   # 15

    # Tiny-weight layout plumbing only (a few KB, once per call): [out,in] -> [in,out]
    # so the kernel computes x @ W^T with plain jnp.dot; biases reshaped for broadcast.
    w1t = jnp.transpose(w1).astype(jnp.float32)          # (15, 45)
    w2t = jnp.transpose(w2).astype(jnp.float32)          # (45, 15)
    b1r = b1.reshape(1, D_hid).astype(jnp.float32)       # (1, 45)
    b2r = b2.reshape(1, D_out).astype(jnp.float32)       # (1, 15)

    # Degenerate tiny batch: a block must span at least one 8-row sublane tile.
    x_in, B_eff = x, B
    if B < 8:
        x_in = jnp.pad(x, ((0, 8 - B), (0, 0)))
        B_eff = 8

    # Tile selection: big tiles (amortize ~0.35us/step grid overhead), but for large B keep
    # >= min_steps grid steps so the "parallel" batch axis balances across v7x's 2 TCs.
    TB = tb
    if B_eff >= min_steps * 2048:
        TB = min(TB, _round_up(pl.cdiv(B_eff, min_steps), 256))
    TB = min(TB, max(8, (B_eff // 8) * 8))               # never exceed the batch; 8-row aligned
    grid = (pl.cdiv(B_eff, TB),)                         # partial last block masked by Pallas

    cost = pl.CostEstimate(
        flops=2 * B_eff * (D_in * D_hid + D_hid * D_out),
        transcendentals=B_eff * D_out,
        bytes_accessed=4 * (B_eff * (D_in + D_out)
                            + w1.size + b1.size + w2.size + b2.size),
    )

    out = pl.pallas_call(
        autoencoder_kernel,
        out_shape=jax.ShapeDtypeStruct((B_eff, D_out), jnp.float32),
        grid_spec=pltpu.PrefetchScalarGridSpec(
            num_scalar_prefetch=0,
            grid=grid,
            in_specs=[
                pl.BlockSpec((TB, D_in), lambda i: (i, 0)),      # x tile, natural layout
                pl.BlockSpec((D_in, D_hid), lambda i: (0, 0)),   # W1^T resident
                pl.BlockSpec((1, D_hid), lambda i: (0, 0)),      # b1 resident
                pl.BlockSpec((D_hid, D_out), lambda i: (0, 0)),  # W2^T resident
                pl.BlockSpec((1, D_out), lambda i: (0, 0)),      # b2 resident
            ],
            out_specs=pl.BlockSpec((TB, D_out), lambda i: (i, 0)),
        ),
        compiler_params=pltpu.CompilerParams(
            dimension_semantics=("parallel",),       # shards batch grid across TCs on v7x
            vmem_limit_bytes=48 * 1024 * 1024,       # lane-padded blocks ~20 MiB at TB=8192
        ),
        cost_estimate=cost,
    )(x_in, w1t, b1r, w2t, b2r)

    return out if B_eff == B else out[:B]


def init_params(key):
    """PyTorch nn.Linear default init: U[-1/sqrt(fan_in), +1/sqrt(fan_in)], [out,in] layout."""
    k1, k2, k3, k4 = jax.random.split(key, 4)
    bound1 = 1.0 / jnp.sqrt(15.0)
    bound2 = 1.0 / jnp.sqrt(45.0)
    w1 = jax.random.uniform(k1, (45, 15), jnp.float32, -bound1, bound1)
    b1 = jax.random.uniform(k2, (45,), jnp.float32, -bound1, bound1)
    w2 = jax.random.uniform(k3, (15, 45), jnp.float32, -bound2, bound2)
    b2 = jax.random.uniform(k4, (15,), jnp.float32, -bound2, bound2)
    return w1, b1, w2, b2


def reference_forward(x, w1, b1, w2, b2):
    h = jnp.maximum(x @ w1.T + b1, 0.0)
    return 1.0 / (1.0 + jnp.exp(-(h @ w2.T + b2)))


if __name__ == "__main__":
    key = jax.random.PRNGKey(0)
    kx, kx2, kp = jax.random.split(key, 3)
    w1, b1, w2, b2 = init_params(kp)

    # Small batch, exact block.
    B = 8
    x = jax.random.normal(kx, (B, 15), jnp.float32)
    out = jax.block_until_ready(autoencoder_forward(x, w1, b1, w2, b2))
    ref = reference_forward(x, w1, b1, w2, b2)
    assert out.shape == (B, 15), out.shape
    assert jnp.allclose(out, ref, atol=1e-4, rtol=1e-4), "mismatch vs reference (B=8)"

    # Ragged batch, exercises the masked partial last block (no padding in the wrapper).
    B2 = 13
    x2 = jax.random.normal(kx2, (B2, 15), jnp.float32)
    out2 = jax.block_until_ready(autoencoder_forward(x2, w1, b1, w2, b2))
    ref2 = reference_forward(x2, w1, b1, w2, b2)
    assert out2.shape == (B2, 15), out2.shape
    assert jnp.allclose(out2, ref2, atol=1e-4, rtol=1e-4), "mismatch vs reference (B=13)"

    print("KERNEL_OK")
</pallas_src>

<mosaic_0001>
module attributes {stable_mosaic.version = 11 : i64} {
  func.func @autoencoder_kernel(%arg0: i32, %arg1: memref<8x15xf32, #tpu.memory_space<vmem>>, %arg2: memref<15x45xf32, #tpu.memory_space<vmem>>, %arg3: memref<1x45xf32, #tpu.memory_space<vmem>>, %arg4: memref<45x15xf32, #tpu.memory_space<vmem>>, %arg5: memref<1x15xf32, #tpu.memory_space<vmem>>, %arg6: memref<8x15xf32, #tpu.memory_space<vmem>>) attributes {dimension_semantics = [#tpu.dimension_semantics<parallel>], iteration_bounds = array<i64: 1>, scalar_prefetch = 0 : i64, scratch_operands = 0 : i64, tpu.core_type = #tpu.core_type<tc>, window_params = [{transform_indices = @transform_0, window_bounds = array<i64: 8, 15>}, {pipeline_mode = #tpu.pipeline_mode<synchronous>, transform_indices = @transform_1, window_bounds = array<i64: 15, 45>}, {pipeline_mode = #tpu.pipeline_mode<synchronous>, transform_indices = @transform_2, window_bounds = array<i64: 1, 45>}, {pipeline_mode = #tpu.pipeline_mode<synchronous>, transform_indices = @transform_3, window_bounds = array<i64: 45, 15>}, {pipeline_mode = #tpu.pipeline_mode<synchronous>, transform_indices = @transform_4, window_bounds = array<i64: 1, 15>}, {transform_indices = @transform_5, window_bounds = array<i64: 8, 15>}]} {
    %c0 = arith.constant 0 : index
    %c0_0 = arith.constant 0 : index
    %0 = vector.load %arg1[%c0, %c0_0] : memref<8x15xf32, #tpu.memory_space<vmem>>, vector<8x15xf32>
    %c0_1 = arith.constant 0 : index
    %c0_2 = arith.constant 0 : index
    %1 = vector.load %arg2[%c0_1, %c0_2] : memref<15x45xf32, #tpu.memory_space<vmem>>, vector<15x45xf32>
    %cst = arith.constant dense<0.000000e+00> : vector<8x45xf32>
    %2 = tpu.matmul %0, %1, %cst {dimension_numbers = #tpu.dot_dimension_numbers<[1], [0], [0], [1], [0, 0, 1, 1], [], []>} : vector<8x15xf32>, vector<15x45xf32>, vector<8x45xf32> -> vector<8x45xf32>
    %c0_3 = arith.constant 0 : index
    %c0_4 = arith.constant 0 : index
    %3 = vector.load %arg3[%c0_3, %c0_4] : memref<1x45xf32, #tpu.memory_space<vmem>>, vector<1x45xf32>
    %4 = vector.broadcast %3 : vector<1x45xf32> to vector<8x45xf32>
    %5 = arith.addf %2, %4 : vector<8x45xf32>
    %cst_5 = arith.constant 0.000000e+00 : f32
    %6 = vector.broadcast %cst_5 : f32 to vector<8x45xf32>
    %7 = arith.maximumf %5, %6 : vector<8x45xf32>
    %c0_6 = arith.constant 0 : index
    %c0_7 = arith.constant 0 : index
    %8 = vector.load %arg4[%c0_6, %c0_7] : memref<45x15xf32, #tpu.memory_space<vmem>>, vector<45x15xf32>
    %cst_8 = arith.constant dense<0.000000e+00> : vector<8x15xf32>
    %9 = tpu.matmul %7, %8, %cst_8 {dimension_numbers = #tpu.dot_dimension_numbers<[1], [0], [0], [1], [0, 0, 1, 1], [], []>} : vector<8x45xf32>, vector<45x15xf32>, vector<8x15xf32> -> vector<8x15xf32>
    %c0_9 = arith.constant 0 : index
    %c0_10 = arith.constant 0 : index
    %10 = vector.load %arg5[%c0_9, %c0_10] : memref<1x15xf32, #tpu.memory_space<vmem>>, vector<1x15xf32>
    %11 = vector.broadcast %10 : vector<1x15xf32> to vector<8x15xf32>
    %12 = arith.addf %9, %11 : vector<8x15xf32>
    %cst_11 = arith.constant 5.000000e-01 : f32
    %13 = vector.broadcast %cst_11 : f32 to vector<8x15xf32>
    %14 = arith.mulf %13, %12 : vector<8x15xf32>
    %15 = math.tanh %14 : vector<8x15xf32>
    %cst_12 = arith.constant 5.000000e-01 : f32
    %16 = vector.broadcast %cst_12 : f32 to vector<8x15xf32>
    %17 = arith.mulf %16, %15 : vector<8x15xf32>
    %cst_13 = arith.constant 5.000000e-01 : f32
    %18 = vector.broadcast %cst_13 : f32 to vector<8x15xf32>
    %19 = arith.addf %17, %18 : vector<8x15xf32>
    %c0_14 = arith.constant 0 : index
    %c0_15 = arith.constant 0 : index
    %20 = vector.load %arg6[%c0_14, %c0_15] : memref<8x15xf32, #tpu.memory_space<vmem>>, vector<8x15xf32>
    tpu.vector_store %arg6[%c0_14, %c0_15], %19 {strides = array<i32>} : memref<8x15xf32, #tpu.memory_space<vmem>>, vector<8x15xf32>,
    return
  }
  func.func @transform_0(%arg0: i32) -> (i32, i32) {
    %c0_i32 = arith.constant 0 : i32
    %c0_i32_0 = arith.constant 0 : i32
    return %arg0, %c0_i32 : i32, i32
  }
  func.func @transform_1(%arg0: i32) -> (i32, i32) {
    %c0_i32 = arith.constant 0 : i32
    %c0_i32_0 = arith.constant 0 : i32
    %c0_i32_1 = arith.constant 0 : i32
    return %c0_i32, %c0_i32_0 : i32, i32
  }
  func.func @transform_2(%arg0: i32) -> (i32, i32) {
    %c0_i32 = arith.constant 0 : i32
    %c0_i32_0 = arith.constant 0 : i32
    %c0_i32_1 = arith.constant 0 : i32
    return %c0_i32, %c0_i32_0 : i32, i32
  }
  func.func @transform_3(%arg0: i32) -> (i32, i32) {
    %c0_i32 = arith.constant 0 : i32
    %c0_i32_0 = arith.constant 0 : i32
    %c0_i32_1 = arith.constant 0 : i32
    return %c0_i32, %c0_i32_0 : i32, i32
  }
  func.func @transform_4(%arg0: i32) -> (i32, i32) {
    %c0_i32 = arith.constant 0 : i32
    %c0_i32_0 = arith.constant 0 : i32
    %c0_i32_1 = arith.constant 0 : i32
    return %c0_i32, %c0_i32_0 : i32, i32
  }
  func.func @transform_5(%arg0: i32) -> (i32, i32) {
    %c0_i32 = arith.constant 0 : i32
    %c0_i32_0 = arith.constant 0 : i32
    return %arg0, %c0_i32 : i32, i32
  }
}

</mosaic_0001>

<llo_original>
// kernel: tpu_custom_call.1
$region0: #{tpu_custom_call.1}
  #allocation0 [shape = 'u32[]', space=smem, size = 0x4, offset = 0x4, fixed_abs, tag = 'smem constant byte address 0x4 - core index']
  #allocation1 [shape = 'u32[144,128]{1,0:T(1,128)}', space=vmem, size = 0x12000, scoped, tag = 'internal scratch']
  %s0 = inlined_call_operand.vmem [shape: f32[8,15], index: 0, kind: input, shape index: {}]
  %s1 = inlined_call_operand.vmem [shape: f32[15,45], index: 1, kind: input, shape index: {}]
  %s2 = inlined_call_operand.vmem [shape: f32[1,45], index: 2, kind: input, shape index: {}]
  %s3 = inlined_call_operand.vmem [shape: f32[45,15], index: 3, kind: input, shape index: {}]
  %s4 = inlined_call_operand.vmem [shape: f32[1,15], index: 4, kind: input, shape index: {}]
  %s5 = inlined_call_operand.hbm [shape: f32[8,15], index: 5, kind: output, shape index: {}]
  %s6 = sld [smem:[#allocation0]]
  $region30: #{tpu_custom_call.1} parent=0
    _
  %s8 = ssub.s32 1, %s6
  %s9 = scalar_select 0, %s8, %s6
  $region1: #{tpu_custom_call.1} parent=0
    #allocation2 [shape = 'u8[4096]{0}', space=vmem, size = 0x1000, scoped, tag = 'output window, operand 0, single buffered']
    #allocation3 [shape = 's32[1]{0}', space=sflag, size = 0x4, scoped, tag = 'scoped memory for tpu_custom_call.1']
    %10 = vsyncpa [#allocation3], 0
    // Predicated region
    $region2: #{tpu_custom_call.1} parent=1 // pred_check
      _
    $region3: #{tpu_custom_call.1} parent=1 // pred_check_branch
      %12 = sbr.rel (0) target = $region5
    $region4: #{tpu_custom_call.1} parent=1 // pred_region
      _
    $region5: #{tpu_custom_call.1} parent=1 // pred_fallthru
      _
    // Predicated region
    $region6: #{tpu_custom_call.1} parent=1 // pred_check
      _
    $region7: #{tpu_custom_call.1} parent=1 // pred_check_branch
      %14 = sbr.rel (0) target = $region9
    $region8: #{tpu_custom_call.1} parent=1 // pred_region
      _
    $region9: #{tpu_custom_call.1} parent=1 // pred_fallthru
      _
    // Predicated region
    $region10: #{tpu_custom_call.1} parent=1 // pred_check
      _
    $region11: #{tpu_custom_call.1} parent=1 // pred_check_branch
      %16 = sbr.rel (0) target = $region13
    $region12: #{tpu_custom_call.1} parent=1 // pred_region
      _
    $region13: #{tpu_custom_call.1} parent=1 // pred_fallthru
      _
    // Predicated region
    $region14: #{tpu_custom_call.1} parent=1 // pred_check
      _
    $region15: #{tpu_custom_call.1} parent=1 // pred_check_branch
      %18 = sbr.rel (0) target = $region17
    $region16: #{tpu_custom_call.1} parent=1 // pred_region
      _
    $region17: #{tpu_custom_call.1} parent=1 // pred_fallthru
      _
    // Predicated region
    $region18: #{tpu_custom_call.1} parent=1 // pred_check
      _
    $region19: #{tpu_custom_call.1} parent=1 // pred_check_branch
      %20 = sbr.rel (0) target = $region21
    $region20: #{tpu_custom_call.1} parent=1 // pred_region
      _
    $region21: #{tpu_custom_call.1} parent=1 // pred_fallthru
      _
    %v21 = vld [vmem:[%s0] sm:$0xff]
    %v22 = vld [vmem:[%s1] sm:$0xff]
    %v23 = vld [vmem:[%s1 + $0x8] sm:$0x7f]
    %v24 = vld [vmem:[%s2] sm:$0x1]
    %v26 = vlaneseq
    %v27 = vshrl.u32 %v26, 7
    %v28 = vsub.s32 0, %v27
    %v29 = vrot.slane %v24, %v28
    %vm31 = vcmask 121856
    %v33 = vsel %vm31, %v21, 0
    %vm35 = vcmask 1046528
    %v37 = vsel %vm35, %v23, 0
    %39 = vmatprep.subr.mxu0 0.0
    %40 = vmatpush1.msra.mxu0 %v22
    %41 = vmatprep.subr.mxu0 0.0
    %42 = vmatpush1.msra.mxu0 %v37
    %43 = vmatprep.subr.mxu0 0.0
    %44 = vmatpush1.msra.mxu0 0.0
    %45 = vmatprep.subr.mxu0 0.0
    %46 = vmatpush1.msra.mxu0 0.0
    %47 = vmatprep.subr.mxu0 0.0
    %48 = vmatpush1.msra.mxu0 0.0
    %49 = vmatprep.subr.mxu0 0.0
    %50 = vmatpush1.msra.mxu0 0.0
    %51 = vmatprep.subr.mxu0 0.0
    %52 = vmatpush1.msra.mxu0 0.0
    %53 = vmatprep.subr.mxu0 0.0
    %54 = vmatpush1.msra.mxu0 0.0
    %55 = vmatprep.subr.mxu0 0.0
    %56 = vmatpush1.msra.mxu0 0.0
    %57 = vmatprep.subr.mxu0 0.0
    %58 = vmatpush1.msra.mxu0 0.0
    %59 = vmatprep.subr.mxu0 0.0
    %60 = vmatpush1.msra.mxu0 0.0
    %61 = vmatprep.subr.mxu0 0.0
    %62 = vmatpush1.msra.mxu0 0.0
    %63 = vmatprep.subr.mxu0 0.0
    %64 = vmatpush1.msra.mxu0 0.0
    %65 = vmatprep.subr.mxu0 0.0
    %66 = vmatpush1.msra.mxu0 0.0
    %67 = vmatprep.subr.mxu0 0.0
    %68 = vmatpush1.msra.mxu0 0.0
    %69 = vmatprep.subr.mxu0 0.0
    %70 = vmatpush1.msra.mxu0 0.0
    %71 = vmatprep.subr.mxu0 0.0
    %72 = vmatpush1.msra.mxu0 0.0
    %73 = vmatprep.subr.mxu0 0.0
    %74 = vmatpush1.msra.mxu0 0.0
    %75 = vmatprep.subr.mxu0 0.0
    %76 = vmatpush1.msra.mxu0 0.0
    %77 = vmatprep.subr.mxu0 0.0
    %78 = vmatpush1.msra.mxu0 0.0
    %79 = vmatprep.subr.mxu0 0.0
    %80 = vmatpush1.msra.mxu0 0.0
    %81 = vmatprep.subr.mxu0 0.0
    %82 = vmatpush1.msra.mxu0 0.0
    %83 = vmatprep.subr.mxu0 0.0
    %84 = vmatpush1.msra.mxu0 0.0
    %85 = vmatprep.subr.mxu0 0.0
    %86 = vmatpush1.msra.mxu0 0.0
    %87 = vmatprep.subr.mxu0 0.0
    %88 = vmatpush1.msra.mxu0 0.0
    %89 = vmatprep.subr.mxu0 0.0
    %90 = vmatpush1.msra.mxu0 0.0
    %91 = vmatprep.subr.mxu0 0.0
    %92 = vmatpush1.msra.mxu0 0.0
    %93 = vmatprep.subr.mxu0 0.0
    %94 = vmatpush1.msra.mxu0 0.0
    %95 = vmatprep.subr.mxu0 0.0
    %96 = vmatpush1.msra.mxu0 0.0
    %97 = vmatprep.subr.mxu0 0.0
    %98 = vmatpush1.msra.mxu0 0.0
    %99 = vmatprep.subr.mxu0 0.0
    %100 = vmatpush1.msra.mxu0 0.0
    %101 = vmatprep.subr.mxu0 0.0
    %102 = vmatpush1.msra.mxu0 0.0
    %103 = vmatprep.mubr.f32.mxu0 0.0
    %104 = vmatmul.mubr.f32.gmra.mrb[0].mxu0 %v33
    %v105 = vpop.f32.mrb[0].mxu0
    %v106 = vadd.f32 %v29, %v105
    %v107 = vpop.f32.mrb[0].mxu0
    %108 = vdwg.mxu0
    %v109 = vmax.f32 %v106, 0.0
    %v110 = vld [vmem:[%s3] sm:$0xff]
    %v111 = vld [vmem:[%s3 + $0x8] sm:$0xff]
    %v112 = vld [vmem:[%s3 + $0x10] sm:$0xff]
    %v113 = vld [vmem:[%s3 + $0x18] sm:$0xff]
    %v114 = vld [vmem:[%s3 + $0x20] sm:$0xff]
    %v115 = vld [vmem:[%s3 + $0x28] sm:$0x1f]
    %v116 = vld [vmem:[%s4] sm:$0x1]
    %v118 = vlaneseq
    %v119 = vshrl.u32 %v118, 7
    %v120 = vsub.s32 0, %v119
    %v121 = vrot.slane %v116, %v120
    %vm123 = vcmask 367616
    %v125 = vsel %vm123, %v109, 0
    %vm127 = vcmask 1044480
    %v129 = vsel %vm127, %v115, 0
    %131 = vmatprep.subr.mxu0 0.0
    %132 = vmatpush1.msra.mxu0 %v110
    %133 = vmatprep.subr.mxu0 0.0
    %134 = vmatpush1.msra.mxu0 %v111
    %135 = vmatprep.subr.mxu0 0.0
    %136 = vmatpush1.msra.mxu0 %v112
    %137 = vmatprep.subr.mxu0 0.0
    %138 = vmatpush1.msra.mxu0 %v113
    %139 = vmatprep.subr.mxu0 0.0
    %140 = vmatpush1.msra.mxu0 %v114
    %141 = vmatprep.subr.mxu0 0.0
    %142 = vmatpush1.msra.mxu0 %v129
    %143 = vmatprep.subr.mxu0 0.0
    %144 = vmatpush1.msra.mxu0 0.0
    %145 = vmatprep.subr.mxu0 0.0
    %146 = vmatpush1.msra.mxu0 0.0
    %147 = vmatprep.subr.mxu0 0.0
    %148 = vmatpush1.msra.mxu0 0.0
    %149 = vmatprep.subr.mxu0 0.0
    %150 = vmatpush1.msra.mxu0 0.0
    %151 = vmatprep.subr.mxu0 0.0
    %152 = vmatpush1.msra.mxu0 0.0
    %153 = vmatprep.subr.mxu0 0.0
    %154 = vmatpush1.msra.mxu0 0.0
    %155 = vmatprep.subr.mxu0 0.0
    %156 = vmatpush1.msra.mxu0 0.0
    %157 = vmatprep.subr.mxu0 0.0
    %158 = vmatpush1.msra.mxu0 0.0
    %159 = vmatprep.subr.mxu0 0.0
    %160 = vmatpush1.msra.mxu0 0.0
    %161 = vmatprep.subr.mxu0 0.0
    %162 = vmatpush1.msra.mxu0 0.0
    %163 = vmatprep.subr.mxu0 0.0
    %164 = vmatpush1.msra.mxu0 0.0
    %165 = vmatprep.subr.mxu0 0.0
    %166 = vmatpush1.msra.mxu0 0.0
    %167 = vmatprep.subr.mxu0 0.0
    %168 = vmatpush1.msra.mxu0 0.0
    %169 = vmatprep.subr.mxu0 0.0
    %170 = vmatpush1.msra.mxu0 0.0
    %171 = vmatprep.subr.mxu0 0.0
    %172 = vmatpush1.msra.mxu0 0.0
    %173 = vmatprep.subr.mxu0 0.0
    %174 = vmatpush1.msra.mxu0 0.0
    %175 = vmatprep.subr.mxu0 0.0
    %176 = vmatpush1.msra.mxu0 0.0
    %177 = vmatprep.subr.mxu0 0.0
    %178 = vmatpush1.msra.mxu0 0.0
    %179 = vmatprep.subr.mxu0 0.0
    %180 = vmatpush1.msra.mxu0 0.0
    %181 = vmatprep.subr.mxu0 0.0
    %182 = vmatpush1.msra.mxu0 0.0
    %183 = vmatprep.subr.mxu0 0.0
    %184 = vmatpush1.msra.mxu0 0.0
    %185 = vmatprep.subr.mxu0 0.0
    %186 = vmatpush1.msra.mxu0 0.0
    %187 = vmatprep.subr.mxu0 0.0
    %188 = vmatpush1.msra.mxu0 0.0
    %189 = vmatprep.subr.mxu0 0.0
    %190 = vmatpush1.msra.mxu0 0.0
    %191 = vmatprep.subr.mxu0 0.0
    %192 = vmatpush1.msra.mxu0 0.0
    %193 = vmatprep.subr.mxu0 0.0
    %194 = vmatpush1.msra.mxu0 0.0
    %195 = vmatprep.mubr.f32.mxu0 0.0
    %196 = vmatmul.mubr.f32.gmra.mrb[0].mxu0 %v125
    %v197 = vpop.f32.mrb[0].mxu0
    %v198 = vadd.f32 %v121, %v197
    %v199 = vpop.f32.mrb[0].mxu0
    %200 = vdwg.mxu0
    %v201 = vmul.f32 %v198, 0.5
    %v202 = vtanh.pop %v201
    %v203 = vmul.f32 %v202, 0.5
    %v204 = vadd.f32 %v203, 0.5
    %205 = vst.msk [vmem:[#allocation2] sm:$0xff] %vm31, %v204
    // Predicated region
    $region22: #{tpu_custom_call.1} parent=1 // pred_check
      _
    $region23: #{tpu_custom_call.1} parent=1 // pred_check_branch
      %207 = sbr.rel (0) target = $region25
    $region24: #{tpu_custom_call.1} parent=1 // pred_region
      %s209 = ssub.s32 128, 128
      %210 = vsyncadd [#allocation3], %s209
      %s212 = sshll.u32 [#allocation2], 4
      %s213 = int_to_ptr.vmem [resolvable:$true] %s212
      %215 = dma.vmem_to_hbm [thread:$0]  %s213, 128, %s5, [#allocation3]
    $region25: #{tpu_custom_call.1} parent=1 // pred_fallthru
      _
    // Predicated region
    $region26: #{tpu_custom_call.1} parent=1 // pred_check
      _
    $region27: #{tpu_custom_call.1} parent=1 // pred_check_branch
      %217 = sbr.rel (0) target = $region29
    $region28: #{tpu_custom_call.1} parent=1 // pred_region
      %218 = dma.done [#allocation3], 128
    $region29: #{tpu_custom_call.1} parent=1 // pred_fallthru
      _
    %219 = vsyncpa [#allocation3], 1

</llo_original>
